<compile_context>
chip_gen: v7x
topology: tpu7x:2x2x1
jax: 0.10.0
libtpu: 0.0.40
codegen_flags: <defaults>
</compile_context>

<pallas_src>
import math
import functools

import jax
import jax.numpy as jnp
from jax.experimental import pallas as pl
from jax.experimental.pallas import tpu as pltpu


def _attn_kernel(x_ref, wqkv_ref, bqkv_ref, wo_ref, bo_ref, o_ref, *,
                 batch, seq, d_model):
    B, S, D = batch, seq, d_model

    x = x_ref[...].astype(jnp.float32)                          # (B*S, D)

    # Fused QKV projection over all tokens: single MXU pass, weights loaded once.
    qkv = jnp.dot(x, wqkv_ref[...],
                  preferred_element_type=jnp.float32) + bqkv_ref[...]   # (B*S, 3D)

    # 1/sqrt(d_k) is already folded into W_q / b_q by the wrapper.
    q = qkv[:, 0 * D:1 * D].reshape(B, S, D)
    k = qkv[:, 1 * D:2 * D].reshape(B, S, D)
    v = qkv[:, 2 * D:3 * D].reshape(B, S, D)

    # scores[b, i, j] = sum_d q[b,i,d] * k[b,j,d]  (contract last dims; no explicit k.T)
    scores = jax.lax.dot_general(
        q, k,
        dimension_numbers=(((2,), (2,)), ((0,), (0,))),
        preferred_element_type=jnp.float32)                     # (B, S, S)

    # Numerically stable softmax; normalization via EUP approximate reciprocal.
    scores = scores - jnp.max(scores, axis=-1, keepdims=True)
    p = jnp.exp(scores)
    inv = pl.reciprocal(jnp.sum(p, axis=-1, keepdims=True), approx=True)
    p = p * inv

    # attn[b, i, d] = sum_j p[b,i,j] * v[b,j,d]
    attn = jax.lax.dot_general(
        p, v,
        dimension_numbers=(((2,), (1,)), ((0,), (0,))),
        preferred_element_type=jnp.float32)                     # (B, S, D)

    # Output projection over all tokens; single lane-contiguous store.
    out = jnp.dot(attn.reshape(B * S, D), wo_ref[...],
                  preferred_element_type=jnp.float32) + bo_ref[...]
    o_ref[...] = out.astype(o_ref.dtype)


def single_head_attention(x, params):
    """x: (B, S, D) float32; params: dict of PyTorch-style (out,in) weights + (D,) biases."""
    B, S, D = x.shape
    scale = 1.0 / math.sqrt(D)

    # One-time weight prep (would be pre-folded in a real deployment):
    #   - transpose to (in, out) for x @ W.T + b semantics
    #   - fold the attention scale into W_q / b_q
    #   - concatenate Q|K|V into a single (D, 3D) projection
    wqkv = jnp.concatenate(
        [params["wq"].T * scale, params["wk"].T, params["wv"].T], axis=1)   # (D, 3D)
    bqkv = jnp.concatenate(
        [params["bq"] * scale, params["bk"], params["bv"]]).reshape(1, 3 * D)
    wo = params["wo"].T                                                     # (D, D)
    bo = params["bo"].reshape(1, D)

    x2 = x.reshape(B * S, D)

    kernel = functools.partial(_attn_kernel, batch=B, seq=S, d_model=D)

    vmem_spec = pl.BlockSpec(memory_space=pltpu.MemorySpace.VMEM)  # whole array in VMEM

    out2 = pl.pallas_call(
        kernel,
        out_shape=jax.ShapeDtypeStruct((B * S, D), x.dtype),
        in_specs=[vmem_spec,   # x (B*S, D)
                  vmem_spec,   # W_qkv (D, 3D)
                  vmem_spec,   # b_qkv (1, 3D)
                  vmem_spec,   # W_o (D, D)
                  vmem_spec],  # b_o (1, D)
        out_specs=vmem_spec,
    )(x2, wqkv, bqkv, wo, bo)

    return out2.reshape(B, S, D)


def _reference(x, params):
    """Plain-JAX reference matching the PyTorch forward exactly."""
    D = x.shape[-1]
    q = x @ params["wq"].T + params["bq"]
    k = x @ params["wk"].T + params["bk"]
    v = x @ params["wv"].T + params["bv"]
    scores = jnp.einsum("bqd,bkd->bqk", q, k) / math.sqrt(D)
    p = jax.nn.softmax(scores, axis=-1)
    attn = jnp.einsum("bqk,bkd->bqd", p, v)
    return attn @ params["wo"].T + params["bo"]


def _init_params(key, d_model):
    """Deterministic nn.Linear-style init (uniform in +/- 1/sqrt(fan_in))."""
    bound = 1.0 / math.sqrt(d_model)
    keys = jax.random.split(key, 8)

    def u(k, shape):
        return jax.random.uniform(k, shape, jnp.float32, -bound, bound)

    return {
        "wq": u(keys[0], (d_model, d_model)), "bq": u(keys[1], (d_model,)),
        "wk": u(keys[2], (d_model, d_model)), "bk": u(keys[3], (d_model,)),
        "wv": u(keys[4], (d_model, d_model)), "bv": u(keys[5], (d_model,)),
        "wo": u(keys[6], (d_model, d_model)), "bo": u(keys[7], (d_model,)),
    }


if __name__ == "__main__":
    B, S, D = 2, 8, 32   # batch=2, seq=8, d_model=32

    root = jax.random.PRNGKey(0)
    kx, kp = jax.random.split(root)
    x = jax.random.normal(kx, (B, S, D), dtype=jnp.float32)
    params = _init_params(kp, D)

    out = single_head_attention(x, params)
    out = jax.block_until_ready(out)

    ref = _reference(x, params)
    assert out.shape == (B, S, D)
    # Tolerance slightly looser than exact-divide version because the softmax
    # normalization uses the EUP approximate reciprocal.
    assert jnp.allclose(out, ref, atol=2e-3, rtol=2e-3), "Pallas kernel mismatch vs reference"

    print("KERNEL_OK")
</pallas_src>

<mosaic_0001>
module attributes {stable_mosaic.version = 11 : i64} {
  func.func @_attn_kernel(%arg0: memref<16x32xf32, #tpu.memory_space<vmem>>, %arg1: memref<32x96xf32, #tpu.memory_space<vmem>>, %arg2: memref<1x96xf32, #tpu.memory_space<vmem>>, %arg3: memref<32x32xf32, #tpu.memory_space<vmem>>, %arg4: memref<1x32xf32, #tpu.memory_space<vmem>>, %arg5: memref<16x32xf32, #tpu.memory_space<vmem>>) attributes {dimension_semantics = [], scalar_prefetch = 0 : i64, scratch_operands = 0 : i64, tpu.core_type = #tpu.core_type<tc>} {
    %c0 = arith.constant 0 : index
    %c0_0 = arith.constant 0 : index
    %0 = vector.load %arg0[%c0, %c0_0] : memref<16x32xf32, #tpu.memory_space<vmem>>, vector<16x32xf32>
    %c0_1 = arith.constant 0 : index
    %c0_2 = arith.constant 0 : index
    %1 = vector.load %arg1[%c0_1, %c0_2] : memref<32x96xf32, #tpu.memory_space<vmem>>, vector<32x96xf32>
    %cst = arith.constant dense<0.000000e+00> : vector<16x96xf32>
    %2 = tpu.matmul %0, %1, %cst {dimension_numbers = #tpu.dot_dimension_numbers<[1], [0], [0], [1], [0, 0, 1, 1], [], []>} : vector<16x32xf32>, vector<32x96xf32>, vector<16x96xf32> -> vector<16x96xf32>
    %c0_3 = arith.constant 0 : index
    %c0_4 = arith.constant 0 : index
    %3 = vector.load %arg2[%c0_3, %c0_4] : memref<1x96xf32, #tpu.memory_space<vmem>>, vector<1x96xf32>
    %4 = vector.broadcast %3 : vector<1x96xf32> to vector<16x96xf32>
    %5 = arith.addf %2, %4 : vector<16x96xf32>
    %6 = vector.extract_strided_slice %5 {offsets = [0, 0], sizes = [16, 32], strides = [1, 1]} : vector<16x96xf32> to vector<16x32xf32>
    %7 = vector.shape_cast %6 : vector<16x32xf32> to vector<2x8x32xf32>
    %8 = vector.extract_strided_slice %5 {offsets = [0, 32], sizes = [16, 32], strides = [1, 1]} : vector<16x96xf32> to vector<16x32xf32>
    %9 = vector.shape_cast %8 : vector<16x32xf32> to vector<2x8x32xf32>
    %10 = vector.extract_strided_slice %5 {offsets = [0, 64], sizes = [16, 32], strides = [1, 1]} : vector<16x96xf32> to vector<16x32xf32>
    %11 = vector.shape_cast %10 : vector<16x32xf32> to vector<2x8x32xf32>
    %cst_5 = arith.constant dense<0.000000e+00> : vector<2x8x8xf32>
    %12 = tpu.matmul %7, %9, %cst_5 {dimension_numbers = #tpu.dot_dimension_numbers<[2], [2], [1], [1], [0, 0, 0, 1, 1, 1], [0], [0]>} : vector<2x8x32xf32>, vector<2x8x32xf32>, vector<2x8x8xf32> -> vector<2x8x8xf32>
    %cst_6 = arith.constant dense<0xFF800000> : vector<2x8xf32>
    %13 = vector.multi_reduction <maximumf>, %12, %cst_6 [2] : vector<2x8x8xf32> to vector<2x8xf32>
    %14 = vector.shape_cast %13 : vector<2x8xf32> to vector<2x8x1xf32>
    %15 = vector.broadcast %14 : vector<2x8x1xf32> to vector<2x8x8xf32>
    %16 = arith.subf %12, %15 : vector<2x8x8xf32>
    %17 = math.exp %16 : vector<2x8x8xf32>
    %cst_7 = arith.constant dense<0.000000e+00> : vector<2x8xf32>
    %18 = vector.multi_reduction <add>, %17, %cst_7 [2] : vector<2x8x8xf32> to vector<2x8xf32>
    %19 = vector.shape_cast %18 : vector<2x8xf32> to vector<2x8x1xf32>
    %20 = tpu.reciprocal %19 {approx = true} : vector<2x8x1xf32> -> vector<2x8x1xf32>
    %21 = vector.broadcast %20 : vector<2x8x1xf32> to vector<2x8x8xf32>
    %22 = arith.mulf %17, %21 : vector<2x8x8xf32>
    %cst_8 = arith.constant dense<0.000000e+00> : vector<2x8x32xf32>
    %23 = tpu.matmul %22, %11, %cst_8 {dimension_numbers = #tpu.dot_dimension_numbers<[2], [1], [1], [2], [0, 0, 0, 1, 1, 2], [0], [0]>} : vector<2x8x8xf32>, vector<2x8x32xf32>, vector<2x8x32xf32> -> vector<2x8x32xf32>
    %24 = vector.shape_cast %23 : vector<2x8x32xf32> to vector<16x32xf32>
    %c0_9 = arith.constant 0 : index
    %c0_10 = arith.constant 0 : index
    %25 = vector.load %arg3[%c0_9, %c0_10] : memref<32x32xf32, #tpu.memory_space<vmem>>, vector<32x32xf32>
    %cst_11 = arith.constant dense<0.000000e+00> : vector<16x32xf32>
    %26 = tpu.matmul %24, %25, %cst_11 {dimension_numbers = #tpu.dot_dimension_numbers<[1], [0], [0], [1], [0, 0, 1, 1], [], []>} : vector<16x32xf32>, vector<32x32xf32>, vector<16x32xf32> -> vector<16x32xf32>
    %c0_12 = arith.constant 0 : index
    %c0_13 = arith.constant 0 : index
    %27 = vector.load %arg4[%c0_12, %c0_13] : memref<1x32xf32, #tpu.memory_space<vmem>>, vector<1x32xf32>
    %28 = vector.broadcast %27 : vector<1x32xf32> to vector<16x32xf32>
    %29 = arith.addf %26, %28 : vector<16x32xf32>
    %c0_14 = arith.constant 0 : index
    %c0_15 = arith.constant 0 : index
    %30 = vector.load %arg5[%c0_14, %c0_15] : memref<16x32xf32, #tpu.memory_space<vmem>>, vector<16x32xf32>
    tpu.vector_store %arg5[%c0_14, %c0_15], %29 {strides = array<i32>} : memref<16x32xf32, #tpu.memory_space<vmem>>, vector<16x32xf32>,
    return
  }
}

</mosaic_0001>

<llo_original>
// kernel: tpu_custom_call.1
$region0: #{tpu_custom_call.1}
  #allocation0 [shape = 'u32[]', space=smem, size = 0x4, offset = 0x4, fixed_abs, tag = 'smem constant byte address 0x4 - core index']
  #allocation1 [shape = 'u32[144,128]{1,0:T(1,128)}', space=vmem, size = 0x12000, scoped, tag = 'internal scratch']
  %s0 = inlined_call_operand.hbm [shape: f32[16,32], index: 0, kind: input, shape index: {}]
  %s1 = inlined_call_operand.hbm [shape: f32[32,96], index: 1, kind: input, shape index: {}]
  %s2 = inlined_call_operand.vmem [shape: f32[1,96], index: 2, kind: input, shape index: {}]
  %s3 = inlined_call_operand.hbm [shape: f32[32,32], index: 3, kind: input, shape index: {}]
  %s4 = inlined_call_operand.vmem [shape: f32[1,32], index: 4, kind: input, shape index: {}]
  %s5 = inlined_call_operand.hbm [shape: f32[16,32], index: 5, kind: output, shape index: {}]
  %s6 = sld [smem:[#allocation0]]
  $region42: #{tpu_custom_call.1} parent=0
    _
  %s8 = ssub.s32 1, %s6
  %s9 = scalar_select 0, %s8, %s6
  $region1: #{tpu_custom_call.1} parent=0
    #allocation2 [shape = 'u8[8192]{0}', space=vmem, size = 0x2000, scoped, tag = 'input window, operand 0, single buffered']
    #allocation3 [shape = 's32[1]{0}', space=sflag, size = 0x4, scoped, tag = 'scoped memory for tpu_custom_call.1']
    #allocation4 [shape = 's32[1]{0}', space=sflag, size = 0x4, scoped, tag = 'scoped memory for tpu_custom_call.1']
    #allocation5 [shape = 'u8[16384]{0}', space=vmem, size = 0x4000, scoped, tag = 'input window, operand 1, single buffered']
    #allocation6 [shape = 's32[1]{0}', space=sflag, size = 0x4, scoped, tag = 'scoped memory for tpu_custom_call.1']
    #allocation7 [shape = 'u8[16384]{0}', space=vmem, size = 0x4000, scoped, tag = 'input window, operand 3, single buffered']
    #allocation8 [shape = 'u8[8192]{0}', space=vmem, size = 0x2000, scoped, tag = 'output window, operand 0, single buffered']
    %10 = vsyncpa [#allocation3], 0
    %11 = vsyncpa [#allocation6], 0
    %12 = vsyncpa [#allocation4], 0
    // Predicated region
    $region2: #{tpu_custom_call.1} parent=1 // pred_check
      _
    $region3: #{tpu_custom_call.1} parent=1 // pred_check_branch
      %14 = sbr.rel (0) target = $region5
    $region4: #{tpu_custom_call.1} parent=1 // pred_region
      %s16 = ssub.s32 256, 256
      %17 = vsyncadd [#allocation3], %s16
      %s18 = sshll.u32 [#allocation2], 4
      %s19 = int_to_ptr.vmem [resolvable:$true] %s18
      %24 = dma.hbm_to_vmem [thread:$0]  %s0, 256, %s19, [#allocation3], 128, 128, 8
    $region5: #{tpu_custom_call.1} parent=1 // pred_fallthru
      _
    // Predicated region
    $region6: #{tpu_custom_call.1} parent=1 // pred_check
      _
    $region7: #{tpu_custom_call.1} parent=1 // pred_check_branch
      %26 = sbr.rel (0) target = $region9
    $region8: #{tpu_custom_call.1} parent=1 // pred_region
      %s28 = ssub.s32 512, 512
      %29 = vsyncadd [#allocation6], %s28
      %s30 = sshll.u32 [#allocation5], 4
      %s31 = int_to_ptr.vmem [resolvable:$true] %s30
      %36 = dma.hbm_to_vmem [thread:$0]  %s1, 512, %s31, [#allocation6], 128, 128, 8
    $region9: #{tpu_custom_call.1} parent=1 // pred_fallthru
      _
    // Predicated region
    $region10: #{tpu_custom_call.1} parent=1 // pred_check
      _
    $region11: #{tpu_custom_call.1} parent=1 // pred_check_branch
      %38 = sbr.rel (0) target = $region13
    $region12: #{tpu_custom_call.1} parent=1 // pred_region
      _
    $region13: #{tpu_custom_call.1} parent=1 // pred_fallthru
      _
    // Predicated region
    $region14: #{tpu_custom_call.1} parent=1 // pred_check
      _
    $region15: #{tpu_custom_call.1} parent=1 // pred_check_branch
      %40 = sbr.rel (0) target = $region17
    $region16: #{tpu_custom_call.1} parent=1 // pred_region
      %s42 = ssub.s32 512, 512
      %43 = vsyncadd [#allocation6], %s42
      %s44 = sshll.u32 [#allocation7], 4
      %s45 = int_to_ptr.vmem [resolvable:$true] %s44
      %50 = dma.hbm_to_vmem [thread:$0]  %s3, 512, %s45, [#allocation6], 128, 128, 8
    $region17: #{tpu_custom_call.1} parent=1 // pred_fallthru
      _
    // Predicated region
    $region18: #{tpu_custom_call.1} parent=1 // pred_check
      _
    $region19: #{tpu_custom_call.1} parent=1 // pred_check_branch
      %52 = sbr.rel (0) target = $region21
    $region20: #{tpu_custom_call.1} parent=1 // pred_region
      _
    $region21: #{tpu_custom_call.1} parent=1 // pred_fallthru
      _
    // Predicated region
    $region22: #{tpu_custom_call.1} parent=1 // pred_check
      _
    $region23: #{tpu_custom_call.1} parent=1 // pred_check_branch
      %54 = sbr.rel (0) target = $region25
    $region24: #{tpu_custom_call.1} parent=1 // pred_region
      %55 = dma.done [#allocation3], 256
    $region25: #{tpu_custom_call.1} parent=1 // pred_fallthru
      _
    // Predicated region
    $region26: #{tpu_custom_call.1} parent=1 // pred_check
      _
    $region27: #{tpu_custom_call.1} parent=1 // pred_check_branch
      %57 = sbr.rel (0) target = $region29
    $region28: #{tpu_custom_call.1} parent=1 // pred_region
      %58 = dma.done [#allocation6], 512
    $region29: #{tpu_custom_call.1} parent=1 // pred_fallthru
      _
    // Predicated region
    $region30: #{tpu_custom_call.1} parent=1 // pred_check
      _
    $region31: #{tpu_custom_call.1} parent=1 // pred_check_branch
      %60 = sbr.rel (0) target = $region33
    $region32: #{tpu_custom_call.1} parent=1 // pred_region
      %61 = dma.done [#allocation6], 512
    $region33: #{tpu_custom_call.1} parent=1 // pred_fallthru
      _
    %v62 = vld [vmem:[#allocation2] sm:$0xff]
    %v63 = vld [vmem:[#allocation2 + $0x8] sm:$0xff]
    %v64 = vld [vmem:[#allocation5] sm:$0xff]
    %v65 = vld [vmem:[#allocation5 + $0x8] sm:$0xff]
    %v66 = vld [vmem:[#allocation5 + $0x10] sm:$0xff]
    %v67 = vld [vmem:[#allocation5 + $0x18] sm:$0xff]
    %v68 = vld [vmem:[%s2] sm:$0x1]
    %v70 = vlaneseq
    %v71 = vshrl.u32 %v70, 7
    %v72 = vsub.s32 0, %v71
    %v73 = vrot.slane %v68, %v72
    %vm75 = vcmask 261120
    %v77 = vsel %vm75, %v62, 0
    %v80 = vsel %vm75, %v63, 0
    %82 = vmatprep.subr.mxu0 0.0
    %83 = vmatpush1.msra.mxu0 %v64
    %84 = vmatprep.subr.mxu0 0.0
    %85 = vmatpush1.msra.mxu0 %v65
    %86 = vmatprep.subr.mxu0 0.0
    %87 = vmatpush1.msra.mxu0 %v66
    %88 = vmatprep.subr.mxu0 0.0
    %89 = vmatpush1.msra.mxu0 %v67
    %90 = vmatprep.subr.mxu0 0.0
    %91 = vmatpush1.msra.mxu0 0.0
    %92 = vmatprep.subr.mxu0 0.0
    %93 = vmatpush1.msra.mxu0 0.0
    %94 = vmatprep.subr.mxu0 0.0
    %95 = vmatpush1.msra.mxu0 0.0
    %96 = vmatprep.subr.mxu0 0.0
    %97 = vmatpush1.msra.mxu0 0.0
    %98 = vmatprep.subr.mxu0 0.0
    %99 = vmatpush1.msra.mxu0 0.0
    %100 = vmatprep.subr.mxu0 0.0
    %101 = vmatpush1.msra.mxu0 0.0
    %102 = vmatprep.subr.mxu0 0.0
    %103 = vmatpush1.msra.mxu0 0.0
    %104 = vmatprep.subr.mxu0 0.0
    %105 = vmatpush1.msra.mxu0 0.0
    %106 = vmatprep.subr.mxu0 0.0
    %107 = vmatpush1.msra.mxu0 0.0
    %108 = vmatprep.subr.mxu0 0.0
    %109 = vmatpush1.msra.mxu0 0.0
    %110 = vmatprep.subr.mxu0 0.0
    %111 = vmatpush1.msra.mxu0 0.0
    %112 = vmatprep.subr.mxu0 0.0
    %113 = vmatpush1.msra.mxu0 0.0
    %114 = vmatprep.subr.mxu0 0.0
    %115 = vmatpush1.msra.mxu0 0.0
    %116 = vmatprep.subr.mxu0 0.0
    %117 = vmatpush1.msra.mxu0 0.0
    %118 = vmatprep.subr.mxu0 0.0
    %119 = vmatpush1.msra.mxu0 0.0
    %120 = vmatprep.subr.mxu0 0.0
    %121 = vmatpush1.msra.mxu0 0.0
    %122 = vmatprep.subr.mxu0 0.0
    %123 = vmatpush1.msra.mxu0 0.0
    %124 = vmatprep.subr.mxu0 0.0
    %125 = vmatpush1.msra.mxu0 0.0
    %126 = vmatprep.subr.mxu0 0.0
    %127 = vmatpush1.msra.mxu0 0.0
    %128 = vmatprep.subr.mxu0 0.0
    %129 = vmatpush1.msra.mxu0 0.0
    %130 = vmatprep.subr.mxu0 0.0
    %131 = vmatpush1.msra.mxu0 0.0
    %132 = vmatprep.subr.mxu0 0.0
    %133 = vmatpush1.msra.mxu0 0.0
    %134 = vmatprep.subr.mxu0 0.0
    %135 = vmatpush1.msra.mxu0 0.0
    %136 = vmatprep.subr.mxu0 0.0
    %137 = vmatpush1.msra.mxu0 0.0
    %138 = vmatprep.subr.mxu0 0.0
    %139 = vmatpush1.msra.mxu0 0.0
    %140 = vmatprep.subr.mxu0 0.0
    %141 = vmatpush1.msra.mxu0 0.0
    %142 = vmatprep.subr.mxu0 0.0
    %143 = vmatpush1.msra.mxu0 0.0
    %144 = vmatprep.subr.mxu0 0.0
    %145 = vmatpush1.msra.mxu0 0.0
    %146 = vmatprep.mubr.f32.mxu0 0.0
    %147 = vmatmul.mubr.f32.gmra.mrb[0].mxu0 %v77
    %v148 = vpop.f32.mrb[0].mxu0
    %v149 = vadd.f32 %v73, %v148
    %v150 = vpop.f32.mrb[0].mxu0
    %151 = vmatprep.mubr.f32.mxu0 0.0
    %152 = vmatmul.mubr.f32.gmra.mrb[0].mxu0 %v80
    %v153 = vpop.f32.mrb[0].mxu0
    %v154 = vadd.f32 %v73, %v153
    %v155 = vpop.f32.mrb[0].mxu0
    %156 = vdwg.mxu0
    %158 = vrot.lane.b32.xlu0 %v149, 96
    %v159 = vpop.permute.xlu0 %158
    %v160 = vsel %vm75, %v149, 0
    %v162 = vsel %vm75, %v159, 0
    %164 = vmatprep.subr.mxu0 0.0
    %165 = vmatpush1.xpose.msra.mxu0 %v162
    %166 = vmatprep.subr.mxu0 0.0
    %167 = vmatpush1.xpose.msra.mxu0 0.0
    %168 = vmatprep.subr.mxu0 0.0
    %169 = vmatpush1.xpose.msra.mxu0 0.0
    %170 = vmatprep.subr.mxu0 0.0
    %171 = vmatpush1.xpose.msra.mxu0 0.0
    %172 = vmatprep.subr.mxu0 0.0
    %173 = vmatpush1.xpose.msra.mxu0 0.0
    %174 = vmatprep.subr.mxu0 0.0
    %175 = vmatpush1.xpose.msra.mxu0 0.0
    %176 = vmatprep.subr.mxu0 0.0
    %177 = vmatpush1.xpose.msra.mxu0 0.0
    %178 = vmatprep.subr.mxu0 0.0
    %179 = vmatpush1.xpose.msra.mxu0 0.0
    %180 = vmatprep.subr.mxu0 0.0
    %181 = vmatpush1.xpose.msra.mxu0 0.0
    %182 = vmatprep.subr.mxu0 0.0
    %183 = vmatpush1.xpose.msra.mxu0 0.0
    %184 = vmatprep.subr.mxu0 0.0
    %185 = vmatpush1.xpose.msra.mxu0 0.0
    %186 = vmatprep.subr.mxu0 0.0
    %187 = vmatpush1.xpose.msra.mxu0 0.0
    %188 = vmatprep.subr.mxu0 0.0
    %189 = vmatpush1.xpose.msra.mxu0 0.0
    %190 = vmatprep.subr.mxu0 0.0
    %191 = vmatpush1.xpose.msra.mxu0 0.0
    %192 = vmatprep.subr.mxu0 0.0
    %193 = vmatpush1.xpose.msra.mxu0 0.0
    %194 = vmatprep.subr.mxu0 0.0
    %195 = vmatpush1.xpose.msra.mxu0 0.0
    %196 = vmatprep.subr.mxu0 0.0
    %197 = vmatpush1.xpose.msra.mxu0 0.0
    %198 = vmatprep.subr.mxu0 0.0
    %199 = vmatpush1.xpose.msra.mxu0 0.0
    %200 = vmatprep.subr.mxu0 0.0
    %201 = vmatpush1.xpose.msra.mxu0 0.0
    %202 = vmatprep.subr.mxu0 0.0
    %203 = vmatpush1.xpose.msra.mxu0 0.0
    %204 = vmatprep.subr.mxu0 0.0
    %205 = vmatpush1.xpose.msra.mxu0 0.0
    %206 = vmatprep.subr.mxu0 0.0
    %207 = vmatpush1.xpose.msra.mxu0 0.0
    %208 = vmatprep.subr.mxu0 0.0
    %209 = vmatpush1.xpose.msra.mxu0 0.0
    %210 = vmatprep.subr.mxu0 0.0
    %211 = vmatpush1.xpose.msra.mxu0 0.0
    %212 = vmatprep.subr.mxu0 0.0
    %213 = vmatpush1.xpose.msra.mxu0 0.0
    %214 = vmatprep.subr.mxu0 0.0
    %215 = vmatpush1.xpose.msra.mxu0 0.0
    %216 = vmatprep.subr.mxu0 0.0
    %217 = vmatpush1.xpose.msra.mxu0 0.0
    %218 = vmatprep.subr.mxu0 0.0
    %219 = vmatpush1.xpose.msra.mxu0 0.0
    %220 = vmatprep.subr.mxu0 0.0
    %221 = vmatpush1.xpose.msra.mxu0 0.0
    %222 = vmatprep.subr.mxu0 0.0
    %223 = vmatpush1.xpose.msra.mxu0 0.0
    %224 = vmatprep.subr.mxu0 0.0
    %225 = vmatpush1.xpose.msra.mxu0 0.0
    %226 = vmatprep.subr.mxu0 0.0
    %227 = vmatpush1.xpose.msra.mxu0 0.0
    %228 = vmatprep.mubr.f32.mxu0 0.0
    %229 = vmatmul.mubr.f32.gmra.mrb[0].mxu0 %v160
    %v230 = vpop.f32.mrb[0].mxu0
    %v231 = vadd.f32 0.0, %v230
    %v232 = vpop.f32.mrb[0].mxu0
    %233 = vdwg.mxu0
    %235 = vrot.lane.b32.xlu0 %v154, 96
    %v236 = vpop.permute.xlu0 %235
    %v237 = vsel %vm75, %v154, 0
    %v239 = vsel %vm75, %v236, 0
    %241 = vmatprep.subr.mxu0 0.0
    %242 = vmatpush1.xpose.msra.mxu0 %v239
    %243 = vmatprep.subr.mxu0 0.0
    %244 = vmatpush1.xpose.msra.mxu0 0.0
    %245 = vmatprep.subr.mxu0 0.0
    %246 = vmatpush1.xpose.msra.mxu0 0.0
    %247 = vmatprep.subr.mxu0 0.0
    %248 = vmatpush1.xpose.msra.mxu0 0.0
    %249 = vmatprep.subr.mxu0 0.0
    %250 = vmatpush1.xpose.msra.mxu0 0.0
    %251 = vmatprep.subr.mxu0 0.0
    %252 = vmatpush1.xpose.msra.mxu0 0.0
    %253 = vmatprep.subr.mxu0 0.0
    %254 = vmatpush1.xpose.msra.mxu0 0.0
    %255 = vmatprep.subr.mxu0 0.0
    %256 = vmatpush1.xpose.msra.mxu0 0.0
    %257 = vmatprep.subr.mxu0 0.0
    %258 = vmatpush1.xpose.msra.mxu0 0.0
    %259 = vmatprep.subr.mxu0 0.0
    %260 = vmatpush1.xpose.msra.mxu0 0.0
    %261 = vmatprep.subr.mxu0 0.0
    %262 = vmatpush1.xpose.msra.mxu0 0.0
    %263 = vmatprep.subr.mxu0 0.0
    %264 = vmatpush1.xpose.msra.mxu0 0.0
    %265 = vmatprep.subr.mxu0 0.0
    %266 = vmatpush1.xpose.msra.mxu0 0.0
    %267 = vmatprep.subr.mxu0 0.0
    %268 = vmatpush1.xpose.msra.mxu0 0.0
    %269 = vmatprep.subr.mxu0 0.0
    %270 = vmatpush1.xpose.msra.mxu0 0.0
    %271 = vmatprep.subr.mxu0 0.0
    %272 = vmatpush1.xpose.msra.mxu0 0.0
    %273 = vmatprep.subr.mxu0 0.0
    %274 = vmatpush1.xpose.msra.mxu0 0.0
    %275 = vmatprep.subr.mxu0 0.0
    %276 = vmatpush1.xpose.msra.mxu0 0.0
    %277 = vmatprep.subr.mxu0 0.0
    %278 = vmatpush1.xpose.msra.mxu0 0.0
    %279 = vmatprep.subr.mxu0 0.0
    %280 = vmatpush1.xpose.msra.mxu0 0.0
    %281 = vmatprep.subr.mxu0 0.0
    %282 = vmatpush1.xpose.msra.mxu0 0.0
    %283 = vmatprep.subr.mxu0 0.0
    %284 = vmatpush1.xpose.msra.mxu0 0.0
    %285 = vmatprep.subr.mxu0 0.0
    %286 = vmatpush1.xpose.msra.mxu0 0.0
    %287 = vmatprep.subr.mxu0 0.0
    %288 = vmatpush1.xpose.msra.mxu0 0.0
    %289 = vmatprep.subr.mxu0 0.0
    %290 = vmatpush1.xpose.msra.mxu0 0.0
    %291 = vmatprep.subr.mxu0 0.0
    %292 = vmatpush1.xpose.msra.mxu0 0.0
    %293 = vmatprep.subr.mxu0 0.0
    %294 = vmatpush1.xpose.msra.mxu0 0.0
    %295 = vmatprep.subr.mxu0 0.0
    %296 = vmatpush1.xpose.msra.mxu0 0.0
    %297 = vmatprep.subr.mxu0 0.0
    %298 = vmatpush1.xpose.msra.mxu0 0.0
    %299 = vmatprep.subr.mxu0 0.0
    %300 = vmatpush1.xpose.msra.mxu0 0.0
    %301 = vmatprep.subr.mxu0 0.0
    %302 = vmatpush1.xpose.msra.mxu0 0.0
    %303 = vmatprep.subr.mxu0 0.0
    %304 = vmatpush1.xpose.msra.mxu0 0.0
    %305 = vmatprep.mubr.f32.mxu0 0.0
    %306 = vmatmul.mubr.f32.gmra.mrb[0].mxu0 %v237
    %v307 = vpop.f32.mrb[0].mxu0
    %v308 = vadd.f32 0.0, %v307
    %v309 = vpop.f32.mrb[0].mxu0
    %310 = vdwg.mxu0
    %vm311 = vcmask 64512
    %v312 = vsel %vm311, %v231, -inf
    %313 = vmax.xlane.f32.xlu0 %v312
    %v314 = vpop.xlane.xlu0 %313
    %v315 = vsel %vm311, %v308, -inf
    %316 = vmax.xlane.f32.xlu0 %v315
    %v317 = vpop.xlane.xlu0 %316
    %v318 = vsub.f32 %v231, %v314
    %v319 = vsub.f32 %v308, %v317
    %v320 = vmul.f32 %v318, 1.442695
    %v321 = vpow.pop %v320
    %v322 = vmul.f32 %v319, 1.442695
    %v323 = vpow.pop %v322
    %v324 = vsel %vm311, %v321, 0.0
    %325 = vadd.xlane.f32.xlu0 %v324
    %v326 = vpop.xlane.xlu0 %325
    %v327 = vsel %vm311, %v323, 0.0
    %328 = vadd.xlane.f32.xlu0 %v327
    %v329 = vpop.xlane.xlu0 %328
    %v330 = vrcp.pop %v326
    %v331 = vrcp.pop %v329
    %v332 = vmul.f32 %v321, %v330
    %v333 = vmul.f32 %v323, %v331
    %334 = vrot.lane.b32.xlu0 %v149, 64
    %v335 = vpop.permute.xlu0 %334
    %v338 = vsel %vm311, %v332, 0
    %340 = vmatprep.subr.mxu0 0.0
    %341 = vmatpush1.msra.mxu0 %v335
    %342 = vmatprep.subr.mxu0 0.0
    %343 = vmatpush1.msra.mxu0 0.0
    %344 = vmatprep.subr.mxu0 0.0
    %345 = vmatpush1.msra.mxu0 0.0
    %346 = vmatprep.subr.mxu0 0.0
    %347 = vmatpush1.msra.mxu0 0.0
    %348 = vmatprep.subr.mxu0 0.0
    %349 = vmatpush1.msra.mxu0 0.0
    %350 = vmatprep.subr.mxu0 0.0
    %351 = vmatpush1.msra.mxu0 0.0
    %352 = vmatprep.subr.mxu0 0.0
    %353 = vmatpush1.msra.mxu0 0.0
    %354 = vmatprep.subr.mxu0 0.0
    %355 = vmatpush1.msra.mxu0 0.0
    %356 = vmatprep.subr.mxu0 0.0
    %357 = vmatpush1.msra.mxu0 0.0
    %358 = vmatprep.subr.mxu0 0.0
    %359 = vmatpush1.msra.mxu0 0.0
    %360 = vmatprep.subr.mxu0 0.0
    %361 = vmatpush1.msra.mxu0 0.0
    %362 = vmatprep.subr.mxu0 0.0
    %363 = vmatpush1.msra.mxu0 0.0
    %364 = vmatprep.subr.mxu0 0.0
    %365 = vmatpush1.msra.mxu0 0.0
    %366 = vmatprep.subr.mxu0 0.0
    %367 = vmatpush1.msra.mxu0 0.0
    %368 = vmatprep.subr.mxu0 0.0
    %369 = vmatpush1.msra.mxu0 0.0
    %370 = vmatprep.subr.mxu0 0.0
    %371 = vmatpush1.msra.mxu0 0.0
    %372 = vmatprep.subr.mxu0 0.0
    %373 = vmatpush1.msra.mxu0 0.0
    %374 = vmatprep.subr.mxu0 0.0
    %375 = vmatpush1.msra.mxu0 0.0
    %376 = vmatprep.subr.mxu0 0.0
    %377 = vmatpush1.msra.mxu0 0.0
    %378 = vmatprep.subr.mxu0 0.0
    %379 = vmatpush1.msra.mxu0 0.0
    %380 = vmatprep.subr.mxu0 0.0
    %381 = vmatpush1.msra.mxu0 0.0
    %382 = vmatprep.subr.mxu0 0.0
    %383 = vmatpush1.msra.mxu0 0.0
    %384 = vmatprep.subr.mxu0 0.0
    %385 = vmatpush1.msra.mxu0 0.0
    %386 = vmatprep.subr.mxu0 0.0
    %387 = vmatpush1.msra.mxu0 0.0
    %388 = vmatprep.subr.mxu0 0.0
    %389 = vmatpush1.msra.mxu0 0.0
    %390 = vmatprep.subr.mxu0 0.0
    %391 = vmatpush1.msra.mxu0 0.0
    %392 = vmatprep.subr.mxu0 0.0
    %393 = vmatpush1.msra.mxu0 0.0
    %394 = vmatprep.subr.mxu0 0.0
    %395 = vmatpush1.msra.mxu0 0.0
    %396 = vmatprep.subr.mxu0 0.0
    %397 = vmatpush1.msra.mxu0 0.0
    %398 = vmatprep.subr.mxu0 0.0
    %399 = vmatpush1.msra.mxu0 0.0
    %400 = vmatprep.subr.mxu0 0.0
    %401 = vmatpush1.msra.mxu0 0.0
    %402 = vmatprep.subr.mxu0 0.0
    %403 = vmatpush1.msra.mxu0 0.0
    %404 = vmatprep.mubr.f32.mxu0 0.0
    %405 = vmatmul.mubr.f32.gmra.mrb[0].mxu0 %v338
    %v406 = vpop.f32.mrb[0].mxu0
    %v407 = vadd.f32 0.0, %v406
    %v408 = vpop.f32.mrb[0].mxu0
    %409 = vdwg.mxu0
    %410 = vrot.lane.b32.xlu0 %v154, 64
    %v411 = vpop.permute.xlu0 %410
    %v414 = vsel %vm311, %v333, 0
    %416 = vmatprep.subr.mxu0 0.0
    %417 = vmatpush1.msra.mxu0 %v411
    %418 = vmatprep.subr.mxu0 0.0
    %419 = vmatpush1.msra.mxu0 0.0
    %420 = vmatprep.subr.mxu0 0.0
    %421 = vmatpush1.msra.mxu0 0.0
    %422 = vmatprep.subr.mxu0 0.0
    %423 = vmatpush1.msra.mxu0 0.0
    %424 = vmatprep.subr.mxu0 0.0
    %425 = vmatpush1.msra.mxu0 0.0
    %426 = vmatprep.subr.mxu0 0.0
    %427 = vmatpush1.msra.mxu0 0.0
    %428 = vmatprep.subr.mxu0 0.0
    %429 = vmatpush1.msra.mxu0 0.0
    %430 = vmatprep.subr.mxu0 0.0
    %431 = vmatpush1.msra.mxu0 0.0
    %432 = vmatprep.subr.mxu0 0.0
    %433 = vmatpush1.msra.mxu0 0.0
    %434 = vmatprep.subr.mxu0 0.0
    %435 = vmatpush1.msra.mxu0 0.0
    %436 = vmatprep.subr.mxu0 0.0
    %437 = vmatpush1.msra.mxu0 0.0
    %438 = vmatprep.subr.mxu0 0.0
    %439 = vmatpush1.msra.mxu0 0.0
    %440 = vmatprep.subr.mxu0 0.0
    %441 = vmatpush1.msra.mxu0 0.0
    %442 = vmatprep.subr.mxu0 0.0
    %443 = vmatpush1.msra.mxu0 0.0
    %444 = vmatprep.subr.mxu0 0.0
    %445 = vmatpush1.msra.mxu0 0.0
    %446 = vmatprep.subr.mxu0 0.0
    %447 = vmatpush1.msra.mxu0 0.0
    %448 = vmatprep.subr.mxu0 0.0
    %449 = vmatpush1.msra.mxu0 0.0
    %450 = vmatprep.subr.mxu0 0.0
    %451 = vmatpush1.msra.mxu0 0.0
    %452 = vmatprep.subr.mxu0 0.0
    %453 = vmatpush1.msra.mxu0 0.0
    %454 = vmatprep.subr.mxu0 0.0
    %455 = vmatpush1.msra.mxu0 0.0
    %456 = vmatprep.subr.mxu0 0.0
    %457 = vmatpush1.msra.mxu0 0.0
    %458 = vmatprep.subr.mxu0 0.0
    %459 = vmatpush1.msra.mxu0 0.0
    %460 = vmatprep.subr.mxu0 0.0
    %461 = vmatpush1.msra.mxu0 0.0
    %462 = vmatprep.subr.mxu0 0.0
    %463 = vmatpush1.msra.mxu0 0.0
    %464 = vmatprep.subr.mxu0 0.0
    %465 = vmatpush1.msra.mxu0 0.0
    %466 = vmatprep.subr.mxu0 0.0
    %467 = vmatpush1.msra.mxu0 0.0
    %468 = vmatprep.subr.mxu0 0.0
    %469 = vmatpush1.msra.mxu0 0.0
    %470 = vmatprep.subr.mxu0 0.0
    %471 = vmatpush1.msra.mxu0 0.0
    %472 = vmatprep.subr.mxu0 0.0
    %473 = vmatpush1.msra.mxu0 0.0
    %474 = vmatprep.subr.mxu0 0.0
    %475 = vmatpush1.msra.mxu0 0.0
    %476 = vmatprep.subr.mxu0 0.0
    %477 = vmatpush1.msra.mxu0 0.0
    %478 = vmatprep.subr.mxu0 0.0
    %479 = vmatpush1.msra.mxu0 0.0
    %480 = vmatprep.mubr.f32.mxu0 0.0
    %481 = vmatmul.mubr.f32.gmra.mrb[0].mxu0 %v414
    %v482 = vpop.f32.mrb[0].mxu0
    %v483 = vadd.f32 0.0, %v482
    %v484 = vpop.f32.mrb[0].mxu0
    %485 = vdwg.mxu0
    %v486 = vld [vmem:[#allocation7] sm:$0xff]
    %v487 = vld [vmem:[#allocation7 + $0x8] sm:$0xff]
    %v488 = vld [vmem:[#allocation7 + $0x10] sm:$0xff]
    %v489 = vld [vmem:[#allocation7 + $0x18] sm:$0xff]
    %v490 = vld [vmem:[%s4] sm:$0x1]
    %v492 = vlaneseq
    %v493 = vshrl.u32 %v492, 7
    %v494 = vsub.s32 0, %v493
    %v495 = vrot.slane %v490, %v494
    %v498 = vsel %vm75, %v407, 0
    %v501 = vsel %vm75, %v483, 0
    %503 = vmatprep.subr.mxu0 0.0
    %504 = vmatpush1.msra.mxu0 %v486
    %505 = vmatprep.subr.mxu0 0.0
    %506 = vmatpush1.msra.mxu0 %v487
    %507 = vmatprep.subr.mxu0 0.0
    %508 = vmatpush1.msra.mxu0 %v488
    %509 = vmatprep.subr.mxu0 0.0
    %510 = vmatpush1.msra.mxu0 %v489
    %511 = vmatprep.subr.mxu0 0.0
    %512 = vmatpush1.msra.mxu0 0.0
    %513 = vmatprep.subr.mxu0 0.0
    %514 = vmatpush1.msra.mxu0 0.0
    %515 = vmatprep.subr.mxu0 0.0
    %516 = vmatpush1.msra.mxu0 0.0
    %517 = vmatprep.subr.mxu0 0.0
    %518 = vmatpush1.msra.mxu0 0.0
    %519 = vmatprep.subr.mxu0 0.0
    %520 = vmatpush1.msra.mxu0 0.0
    %521 = vmatprep.subr.mxu0 0.0
    %522 = vmatpush1.msra.mxu0 0.0
    %523 = vmatprep.subr.mxu0 0.0
    %524 = vmatpush1.msra.mxu0 0.0
    %525 = vmatprep.subr.mxu0 0.0
    %526 = vmatpush1.msra.mxu0 0.0
    %527 = vmatprep.subr.mxu0 0.0
    %528 = vmatpush1.msra.mxu0 0.0
    %529 = vmatprep.subr.mxu0 0.0
    %530 = vmatpush1.msra.mxu0 0.0
    %531 = vmatprep.subr.mxu0 0.0
    %532 = vmatpush1.msra.mxu0 0.0
    %533 = vmatprep.subr.mxu0 0.0
    %534 = vmatpush1.msra.mxu0 0.0
    %535 = vmatprep.subr.mxu0 0.0
    %536 = vmatpush1.msra.mxu0 0.0
    %537 = vmatprep.subr.mxu0 0.0
    %538 = vmatpush1.msra.mxu0 0.0
    %539 = vmatprep.subr.mxu0 0.0
    %540 = vmatpush1.msra.mxu0 0.0
    %541 = vmatprep.subr.mxu0 0.0
    %542 = vmatpush1.msra.mxu0 0.0
    %543 = vmatprep.subr.mxu0 0.0
    %544 = vmatpush1.msra.mxu0 0.0
    %545 = vmatprep.subr.mxu0 0.0
    %546 = vmatpush1.msra.mxu0 0.0
    %547 = vmatprep.subr.mxu0 0.0
    %548 = vmatpush1.msra.mxu0 0.0
    %549 = vmatprep.subr.mxu0 0.0
    %550 = vmatpush1.msra.mxu0 0.0
    %551 = vmatprep.subr.mxu0 0.0
    %552 = vmatpush1.msra.mxu0 0.0
    %553 = vmatprep.subr.mxu0 0.0
    %554 = vmatpush1.msra.mxu0 0.0
    %555 = vmatprep.subr.mxu0 0.0
    %556 = vmatpush1.msra.mxu0 0.0
    %557 = vmatprep.subr.mxu0 0.0
    %558 = vmatpush1.msra.mxu0 0.0
    %559 = vmatprep.subr.mxu0 0.0
    %560 = vmatpush1.msra.mxu0 0.0
    %561 = vmatprep.subr.mxu0 0.0
    %562 = vmatpush1.msra.mxu0 0.0
    %563 = vmatprep.subr.mxu0 0.0
    %564 = vmatpush1.msra.mxu0 0.0
    %565 = vmatprep.subr.mxu0 0.0
    %566 = vmatpush1.msra.mxu0 0.0
    %567 = vmatprep.mubr.f32.mxu0 0.0
    %568 = vmatmul.mubr.f32.gmra.mrb[0].mxu0 %v498
    %v569 = vpop.f32.mrb[0].mxu0
    %v570 = vadd.f32 %v495, %v569
    %v571 = vpop.f32.mrb[0].mxu0
    %572 = vmatprep.mubr.f32.mxu0 0.0
    %573 = vmatmul.mubr.f32.gmra.mrb[0].mxu0 %v501
    %v574 = vpop.f32.mrb[0].mxu0
    %v575 = vadd.f32 %v495, %v574
    %v576 = vpop.f32.mrb[0].mxu0
    %577 = vdwg.mxu0
    %578 = vst.msk [vmem:[#allocation8] sm:$0xff] %vm75, %v570
    %579 = vst.msk [vmem:[#allocation8 + $0x8] sm:$0xff] %vm75, %v575
    // Predicated region
    $region34: #{tpu_custom_call.1} parent=1 // pred_check
      _
    $region35: #{tpu_custom_call.1} parent=1 // pred_check_branch
      %581 = sbr.rel (0) target = $region37
    $region36: #{tpu_custom_call.1} parent=1 // pred_region
      %s583 = ssub.s32 256, 256
      %584 = vsyncadd [#allocation4], %s583
      %s585 = sshll.u32 [#allocation8], 4
      %s586 = int_to_ptr.vmem [resolvable:$true] %s585
      %591 = dma.vmem_to_hbm [thread:$0]  %s586, 256, %s5, [#allocation4], 128, 128, 8
    $region37: #{tpu_custom_call.1} parent=1 // pred_fallthru
      _
    // Predicated region
    $region38: #{tpu_custom_call.1} parent=1 // pred_check
      _
    $region39: #{tpu_custom_call.1} parent=1 // pred_check_branch
      %593 = sbr.rel (0) target = $region41
    $region40: #{tpu_custom_call.1} parent=1 // pred_region
      %594 = dma.done [#allocation4], 256
    $region41: #{tpu_custom_call.1} parent=1 // pred_fallthru
      _
    %595 = vsyncpa [#allocation3], 1
    %596 = vsyncpa [#allocation6], 1
    %597 = vsyncpa [#allocation4], 1

</llo_original>
